<compile_context>
chip_gen: v5e
topology: v5e:2x2
jax: 0.10.0
libtpu: 0.0.40
codegen_flags: <defaults>
</compile_context>

<pallas_src>
import functools

import jax
import jax.numpy as jnp
from jax.experimental import pallas as pl
from jax.experimental.pallas import tpu as pltpu

LANE = 128       # lane width (last dim of a vreg)
ACC_ROWS = 64    # rows of the resident accumulator block (8 f32 vregs)
MAX_TM = 8192    # max rows per grid step -> 8192*128*4B = 4 MiB per f32 input tile


def _round_up(x, m):
    return ((x + m - 1) // m) * m


def _num_tensorcores():
    """Best-effort TensorCore count per chip; fall back to 1 (safe, unsplit path)."""
    try:
        info = pltpu.get_tpu_info()
    except Exception:
        return 1
    for attr in ("num_cores", "core_count", "num_tensorcores",
                 "tensorcore_count", "cores_per_chip"):
        v = getattr(info, attr, None)
        try:
            v = int(v)
        except (TypeError, ValueError):
            continue
        if v > 0:
            return v
    return 1


def _l1_sum_kernel(p_ref, t_ref, o_ref, *, rows, tm, bps, needs_mask):
    """Accumulates per-lane partial sums of |p - t| into a resident (ACC_ROWS, 128) block."""
    c = pl.program_id(0)   # TensorCore split (parallel)
    i = pl.program_id(1)   # reduction steps within this split (arbitrary)

    @pl.when(i == 0)
    def _():
        o_ref[...] = jnp.zeros_like(o_ref)

    # Cast at the vreg level (HBM/VMEM traffic stays in the input dtype, e.g. bf16).
    diff = jnp.abs(p_ref[...].astype(jnp.float32) - t_ref[...].astype(jnp.float32))

    def fold(d):
        # tm // ACC_ROWS groups folded into 8 independent accumulator vregs (pure VPU).
        return d.reshape(tm // ACC_ROWS, ACC_ROWS, LANE).sum(axis=0)

    if not needs_mask:
        o_ref[...] += fold(diff)
    else:
        block = c * bps + i              # logical (unclamped) block index
        full_blocks = rows // tm         # blocks that lie entirely inside the array

        # Fast path: fully in-bounds blocks skip the iota/compare/select entirely.
        @pl.when(block < full_blocks)
        def _():
            o_ref[...] += fold(diff)

        # Tail / duplicated (clamped) blocks: zero out rows past the end of the array.
        @pl.when(block >= full_blocks)
        def _():
            row_ids = block * tm + jax.lax.broadcasted_iota(jnp.int32, (tm, LANE), 0)
            o_ref[...] += fold(jnp.where(row_ids < rows, diff, jnp.float32(0.0)))


def _l1_sum_main(p2, t2, rows):
    """sum(|p2 - t2|) over a (rows, 128) pair via the Pallas kernel. Returns f32 scalar."""
    # Tile rows: multiple of 64 => multiple of every dtype's packed sublane tile and
    # of ACC_ROWS; capped at 4 MiB/input (f32) to respect v7x's 64 MiB VMEM.
    tm = min(MAX_TM, _round_up(rows, ACC_ROWS))
    nblocks = pl.cdiv(rows, tm)

    ncores = _num_tensorcores()
    nsplit = ncores if (ncores > 1 and nblocks >= ncores) else 1
    bps = pl.cdiv(nblocks, nsplit)                 # blocks per split
    # Mask needed iff a block is partial or a split gets a duplicated (clamped) block.
    needs_mask = (rows % tm != 0) or (nsplit * bps != nblocks)
    assert needs_mask or (nsplit * bps == nblocks)

    kernel = functools.partial(
        _l1_sum_kernel, rows=rows, tm=tm, bps=bps, needs_mask=needs_mask)

    # Clamp the block index so no DMA ever starts past the end of the array;
    # duplicated blocks are fully zeroed by the in-kernel mask (block*tm >= rows).
    in_spec = pl.BlockSpec(
        (tm, LANE),
        lambda c, i: (jnp.minimum(c * bps + i, nblocks - 1), 0))

    # Lane-dense (ACC_ROWS, 128) accumulator block per split; resident across the i axis.
    out_spec = pl.BlockSpec((ACC_ROWS, LANE), lambda c, i: (c, 0))

    # 2 inputs x 2 buffers x tile + output/internal headroom; at least 32 MiB so large
    # tiles also clear v5e's 16 MiB scoped default, capped below v7x's 64 MiB physical.
    tile_bytes = tm * LANE * p2.dtype.itemsize
    vmem_limit = int(min(48 << 20, max(32 << 20, 4 * tile_bytes + (8 << 20))))

    partials = pl.pallas_call(
        kernel,
        out_shape=jax.ShapeDtypeStruct((nsplit * ACC_ROWS, LANE), jnp.float32),
        grid_spec=pltpu.PrefetchScalarGridSpec(
            num_scalar_prefetch=0,
            grid=(nsplit, bps),
            in_specs=[in_spec, in_spec],
            out_specs=out_spec,
        ),
        compiler_params=pltpu.CompilerParams(
            dimension_semantics=("parallel", "arbitrary"),
            vmem_limit_bytes=vmem_limit,
        ),
    )(p2, t2)

    # Tiny final cross-lane reduce: glue, not the hot path.
    return jnp.sum(partials)


def l1_loss(preds, targets, avg_factor):
    """loss = sum(|preds - targets|) / avg_factor  (matches the torch L1Loss module)."""
    assert preds.shape == targets.shape
    flat_p = preds.reshape(-1)   # free for contiguous arrays
    flat_t = targets.reshape(-1)
    n = flat_p.size

    rows = n // LANE
    main_n = rows * LANE

    total = jnp.float32(0.0)
    if rows > 0:
        # Common case (n % 128 == 0): the slice is the identity and the reshape is free,
        # so the inputs are only touched once, by the kernel, in their native dtype.
        p2 = flat_p[:main_n].reshape(rows, LANE)
        t2 = flat_t[:main_n].reshape(rows, LANE)
        total = total + _l1_sum_main(p2, t2, rows)
    if main_n < n:
        # <128-element ragged tail: reduce directly in JAX instead of padding/copying
        # both full arrays just to make n a multiple of 128.
        tail = jnp.abs(flat_p[main_n:].astype(jnp.float32)
                       - flat_t[main_n:].astype(jnp.float32))
        total = total + jnp.sum(tail)

    return total / jnp.asarray(avg_factor, jnp.float32)


if __name__ == "__main__":
    key = jax.random.PRNGKey(0)
    ks = jax.random.split(key, 10)

    # Primary small test, consistent with typical detection-loss usage.
    preds = jax.random.normal(ks[0], (2, 4, 16, 16), dtype=jnp.float32)
    targets = jax.random.normal(ks[1], (2, 4, 16, 16), dtype=jnp.float32)
    avg_factor = 37.0
    loss = l1_loss(preds, targets, avg_factor)
    jax.block_until_ready(loss)
    ref = jnp.sum(jnp.abs(preds - targets)) / avg_factor
    assert jnp.allclose(loss, ref, rtol=1e-5, atol=1e-5), (loss, ref)

    # Multi-block path: rows = 8704 -> 2 reduction steps, last block partial
    # (exercises the pl.when-gated mask and the resident accumulator).
    p_big = jax.random.normal(ks[2], (17, 16, 64, 64), dtype=jnp.float32)
    t_big = jax.random.normal(ks[3], (17, 16, 64, 64), dtype=jnp.float32)
    loss_big = l1_loss(p_big, t_big, 123.0)
    jax.block_until_ready(loss_big)
    ref_big = jnp.sum(jnp.abs(p_big - t_big)) / 123.0
    assert jnp.allclose(loss_big, ref_big, rtol=1e-5, atol=1e-5), (loss_big, ref_big)

    # Ragged path: n % 128 != 0 -> kernel on the first rows*128 elements + wrapper tail.
    p_rag = jax.random.normal(ks[4], (3, 5, 17, 13), dtype=jnp.float32)
    t_rag = jax.random.normal(ks[5], (3, 5, 17, 13), dtype=jnp.float32)
    loss_rag = l1_loss(p_rag, t_rag, 7.0)
    jax.block_until_ready(loss_rag)
    ref_rag = jnp.sum(jnp.abs(p_rag - t_rag)) / 7.0
    assert jnp.allclose(loss_rag, ref_rag, rtol=1e-5, atol=1e-5), (loss_rag, ref_rag)

    # bf16 path: native-dtype DMA, per-tile cast to f32 inside the kernel.
    p_bf = jax.random.normal(ks[6], (4, 8, 32), dtype=jnp.bfloat16)
    t_bf = jax.random.normal(ks[7], (4, 8, 32), dtype=jnp.bfloat16)
    loss_bf = l1_loss(p_bf, t_bf, 11.0)
    jax.block_until_ready(loss_bf)
    ref_bf = jnp.sum(jnp.abs(p_bf.astype(jnp.float32) - t_bf.astype(jnp.float32))) / 11.0
    assert jnp.allclose(loss_bf, ref_bf, rtol=1e-4, atol=1e-4), (loss_bf, ref_bf)

    # Tiny (<128 element) input: handled entirely by the wrapper tail path.
    p_tiny = jax.random.normal(ks[8], (5, 9), dtype=jnp.float32)
    t_tiny = jax.random.normal(ks[9], (5, 9), dtype=jnp.float32)
    loss_tiny = l1_loss(p_tiny, t_tiny, 3.0)
    jax.block_until_ready(loss_tiny)
    ref_tiny = jnp.sum(jnp.abs(p_tiny - t_tiny)) / 3.0
    assert jnp.allclose(loss_tiny, ref_tiny, rtol=1e-5, atol=1e-5), (loss_tiny, ref_tiny)

    print("KERNEL_OK")
</pallas_src>

<mosaic_0001>
module attributes {stable_mosaic.version = 11 : i64} {
  func.func @_l1_sum_kernel(%arg0: i32, %arg1: i32, %arg2: memref<64x128xf32, #tpu.memory_space<vmem>>, %arg3: memref<64x128xf32, #tpu.memory_space<vmem>>, %arg4: memref<64x128xf32, #tpu.memory_space<vmem>>) attributes {dimension_semantics = [#tpu.dimension_semantics<parallel>, #tpu.dimension_semantics<arbitrary>], iteration_bounds = array<i64: 1, 1>, scalar_prefetch = 0 : i64, scratch_operands = 0 : i64, tpu.core_type = #tpu.core_type<tc>, window_params = [{transform_indices = @transform_0, window_bounds = array<i64: 64, 128>}, {transform_indices = @transform_1, window_bounds = array<i64: 64, 128>}, {transform_indices = @transform_2, window_bounds = array<i64: 64, 128>}]} {
    %c0_i32 = arith.constant 0 : i32
    %0 = arith.cmpi eq, %arg1, %c0_i32 : i32
    %1 = arith.extui %0 : i1 to i32
    %c0_i32_0 = arith.constant 0 : i32
    %2 = arith.cmpi ne, %1, %c0_i32_0 : i32
    scf.if %2 {
      %cst = arith.constant 0.000000e+00 : f32
      %15 = vector.broadcast %cst : f32 to vector<64x128xf32>
      %c0_8 = arith.constant 0 : index
      %c0_9 = arith.constant 0 : index
      %16 = vector.load %arg4[%c0_8, %c0_9] : memref<64x128xf32, #tpu.memory_space<vmem>>, vector<64x128xf32>
      tpu.vector_store %arg4[%c0_8, %c0_9], %15 {strides = array<i32>} : memref<64x128xf32, #tpu.memory_space<vmem>>, vector<64x128xf32>,
    } else {
    }
    %c0 = arith.constant 0 : index
    %c0_1 = arith.constant 0 : index
    %3 = vector.load %arg2[%c0, %c0_1] : memref<64x128xf32, #tpu.memory_space<vmem>>, vector<64x128xf32>
    %c0_2 = arith.constant 0 : index
    %c0_3 = arith.constant 0 : index
    %4 = vector.load %arg3[%c0_2, %c0_3] : memref<64x128xf32, #tpu.memory_space<vmem>>, vector<64x128xf32>
    %5 = arith.subf %3, %4 : vector<64x128xf32>
    %6 = math.absf %5 : vector<64x128xf32>
    %c1_i32 = arith.constant 1 : i32
    %7 = arith.muli %arg0, %c1_i32 : i32
    %8 = arith.addi %7, %arg1 : i32
    %c0_i32_4 = arith.constant 0 : i32
    %9 = arith.cmpi slt, %8, %c0_i32_4 : i32
    %10 = arith.extui %9 : i1 to i32
    %c0_i32_5 = arith.constant 0 : i32
    %11 = arith.cmpi ne, %10, %c0_i32_5 : i32
    scf.if %11 {
      %c0_8 = arith.constant 0 : index
      %c0_9 = arith.constant 0 : index
      %15 = vector.load %arg4[%c0_8, %c0_9] : memref<64x128xf32, #tpu.memory_space<vmem>>, vector<64x128xf32>
      %16 = vector.shape_cast %6 : vector<64x128xf32> to vector<1x64x128xf32>
      %cst = arith.constant dense<0.000000e+00> : vector<64x128xf32>
      %17 = vector.multi_reduction <add>, %16, %cst [0] : vector<1x64x128xf32> to vector<64x128xf32>
      %18 = arith.addf %15, %17 : vector<64x128xf32>
      %c0_10 = arith.constant 0 : index
      %c0_11 = arith.constant 0 : index
      %19 = vector.load %arg4[%c0_10, %c0_11] : memref<64x128xf32, #tpu.memory_space<vmem>>, vector<64x128xf32>
      tpu.vector_store %arg4[%c0_10, %c0_11], %18 {strides = array<i32>} : memref<64x128xf32, #tpu.memory_space<vmem>>, vector<64x128xf32>,
    } else {
    }
    %c0_i32_6 = arith.constant 0 : i32
    %12 = arith.cmpi sge, %8, %c0_i32_6 : i32
    %13 = arith.extui %12 : i1 to i32
    %c0_i32_7 = arith.constant 0 : i32
    %14 = arith.cmpi ne, %13, %c0_i32_7 : i32
    scf.if %14 {
      %c64_i32 = arith.constant 64 : i32
      %15 = arith.muli %8, %c64_i32 : i32
      %16 = tpu.iota {dimensions = array<i32: 0>} : vector<64x128xi32>
      %17 = vector.broadcast %15 : i32 to vector<64x128xi32>
      %18 = arith.addi %17, %16 : vector<64x128xi32>
      %c0_8 = arith.constant 0 : index
      %c0_9 = arith.constant 0 : index
      %19 = vector.load %arg4[%c0_8, %c0_9] : memref<64x128xf32, #tpu.memory_space<vmem>>, vector<64x128xf32>
      %c16_i32 = arith.constant 16 : i32
      %20 = vector.broadcast %c16_i32 : i32 to vector<64x128xi32>
      %21 = arith.cmpi slt, %18, %20 : vector<64x128xi32>
      %cst = arith.constant 0.000000e+00 : f32
      %22 = vector.broadcast %cst : f32 to vector<64x128xf32>
      %23 = arith.select %21, %6, %22 : vector<64x128xi1>, vector<64x128xf32>
      %24 = vector.shape_cast %23 : vector<64x128xf32> to vector<1x64x128xf32>
      %cst_10 = arith.constant dense<0.000000e+00> : vector<64x128xf32>
      %25 = vector.multi_reduction <add>, %24, %cst_10 [0] : vector<1x64x128xf32> to vector<64x128xf32>
      %26 = arith.addf %19, %25 : vector<64x128xf32>
      %c0_11 = arith.constant 0 : index
      %c0_12 = arith.constant 0 : index
      %27 = vector.load %arg4[%c0_11, %c0_12] : memref<64x128xf32, #tpu.memory_space<vmem>>, vector<64x128xf32>
      tpu.vector_store %arg4[%c0_11, %c0_12], %26 {strides = array<i32>} : memref<64x128xf32, #tpu.memory_space<vmem>>, vector<64x128xf32>,
    } else {
    }
    return
  }
  func.func @transform_0(%arg0: i32, %arg1: i32) -> (i32, i32) {
    %c1_i32 = arith.constant 1 : i32
    %0 = arith.muli %arg0, %c1_i32 : i32
    %1 = arith.addi %0, %arg1 : i32
    %c0_i32 = arith.constant 0 : i32
    %2 = arith.minsi %1, %c0_i32 : i32
    %c0_i32_0 = arith.constant 0 : i32
    %c0_i32_1 = arith.constant 0 : i32
    return %2, %c0_i32_0 : i32, i32
  }
  func.func @transform_1(%arg0: i32, %arg1: i32) -> (i32, i32) {
    %c1_i32 = arith.constant 1 : i32
    %0 = arith.muli %arg0, %c1_i32 : i32
    %1 = arith.addi %0, %arg1 : i32
    %c0_i32 = arith.constant 0 : i32
    %2 = arith.minsi %1, %c0_i32 : i32
    %c0_i32_0 = arith.constant 0 : i32
    %c0_i32_1 = arith.constant 0 : i32
    return %2, %c0_i32_0 : i32, i32
  }
  func.func @transform_2(%arg0: i32, %arg1: i32) -> (i32, i32) {
    %c0_i32 = arith.constant 0 : i32
    %c0_i32_0 = arith.constant 0 : i32
    return %arg0, %c0_i32 : i32, i32
  }
}

</mosaic_0001>

<llo_original>
// kernel: tpu_custom_call.1
$region0: #{tpu_custom_call.1}
  #allocation0 [shape = 'u32[]', space=smem, size = 0x4, offset = 0x4, fixed_abs, tag = 'smem constant byte address 0x4 - core index']
  #allocation1 [shape = 'u32[72,128]{1,0:T(1,128)}', space=vmem, size = 0x9000, scoped, tag = 'internal scratch']
  %s0 = inlined_call_operand.hbm [shape: f32[16,128], index: 0, kind: input, shape index: {}]
  %s1 = inlined_call_operand.hbm [shape: f32[16,128], index: 1, kind: input, shape index: {}]
  %s2 = inlined_call_operand.hbm [shape: f32[64,128], index: 2, kind: output, shape index: {}]
  %s3 = sld [smem:[#allocation0]]
  $region38: #{tpu_custom_call.1} parent=0
    _
  %s5 = ssub.s32 1, %s3
  %s6 = scalar_select 0, %s5, %s3
  $region1: #{tpu_custom_call.1} parent=0
    #allocation2 [shape = 'u8[32768]{0}', space=vmem, size = 0x8000, scoped, tag = 'input window, operand 0, single buffered']
    #allocation3 [shape = 's32[1]{0}', space=sflag, size = 0x4, scoped, tag = 'scoped memory for tpu_custom_call.1']
    #allocation4 [shape = 's32[1]{0}', space=sflag, size = 0x4, scoped, tag = 'scoped memory for tpu_custom_call.1']
    #allocation5 [shape = 'u8[32768]{0}', space=vmem, size = 0x8000, scoped, tag = 'input window, operand 1, single buffered']
    #allocation6 [shape = 's32[1]{0}', space=sflag, size = 0x4, scoped, tag = 'scoped memory for tpu_custom_call.1']
    #allocation7 [shape = 'u8[32768]{0}', space=vmem, size = 0x8000, scoped, tag = 'output window, operand 0, single buffered']
    %7 = vsyncpa [#allocation3], 0
    %8 = vsyncpa [#allocation6], 0
    %9 = vsyncpa [#allocation4], 0
    // Predicated region
    $region2: #{tpu_custom_call.1} parent=1 // pred_check
      _
    $region3: #{tpu_custom_call.1} parent=1 // pred_check_branch
      %11 = sbr.rel (0) target = $region5
    $region4: #{tpu_custom_call.1} parent=1 // pred_region
      %s12 = sadd.s32 0, 0
      %p13 = scmp.lt.s32.totalorder %s12, 0
      %s14 = scalar_select %p13, %s12, 0
      %s15 = smul.u32 8, %s14
      %s16 = ssub.s32 2, %s15
      %s17 = smul.u32 8, %s16
      %s18 = ssub.s32 64, %s17
      %s19 = sshll.u32 %s18, 4
      %20 = vsyncadd [#allocation3], %s19
      %p21 = scmp.ne.s32.totalorder 0, %s17
      %s22 = smul.addr %s15, 8
      %s23 = scalar_lea.hbm %s0, %s22
      %s24 = smul.u32 8, %s16
      %s25 = sshll.u32 %s23, 4
      %s26 = int_to_ptr.hbm [resolvable:$true] %s25
      %s27 = sshll.u32 [#allocation2], 4
      %s28 = int_to_ptr.vmem [resolvable:$true] %s27
      %s29 = sshll.u32 %s24, 4
      %33 = dma.hbm_to_vmem [thread:$0]  (%p21), %s26, %s29, %s28, [#allocation3], 128, 128, 8
    $region5: #{tpu_custom_call.1} parent=1 // pred_fallthru
      _
    // Predicated region
    $region6: #{tpu_custom_call.1} parent=1 // pred_check
      _
    $region7: #{tpu_custom_call.1} parent=1 // pred_check_branch
      %35 = sbr.rel (0) target = $region9
    $region8: #{tpu_custom_call.1} parent=1 // pred_region
      %s36 = sadd.s32 0, 0
      %p37 = scmp.lt.s32.totalorder %s36, 0
      %s38 = scalar_select %p37, %s36, 0
      %s39 = smul.u32 8, %s38
      %s40 = ssub.s32 2, %s39
      %s41 = smul.u32 8, %s40
      %s42 = ssub.s32 64, %s41
      %s43 = sshll.u32 %s42, 4
      %44 = vsyncadd [#allocation6], %s43
      %p45 = scmp.ne.s32.totalorder 0, %s41
      %s46 = smul.addr %s39, 8
      %s47 = scalar_lea.hbm %s1, %s46
      %s48 = smul.u32 8, %s40
      %s49 = sshll.u32 %s47, 4
      %s50 = int_to_ptr.hbm [resolvable:$true] %s49
      %s51 = sshll.u32 [#allocation5], 4
      %s52 = int_to_ptr.vmem [resolvable:$true] %s51
      %s53 = sshll.u32 %s48, 4
      %57 = dma.hbm_to_vmem [thread:$0]  (%p45), %s50, %s53, %s52, [#allocation6], 128, 128, 8
    $region9: #{tpu_custom_call.1} parent=1 // pred_fallthru
      _
    // Predicated region
    $region10: #{tpu_custom_call.1} parent=1 // pred_check
      _
    $region11: #{tpu_custom_call.1} parent=1 // pred_check_branch
      %59 = sbr.rel (0) target = $region13
    $region12: #{tpu_custom_call.1} parent=1 // pred_region
      %61 = dma.done [#allocation3], 1024
    $region13: #{tpu_custom_call.1} parent=1 // pred_fallthru
      _
    // Predicated region
    $region14: #{tpu_custom_call.1} parent=1 // pred_check
      _
    $region15: #{tpu_custom_call.1} parent=1 // pred_check_branch
      %63 = sbr.rel (0) target = $region17
    $region16: #{tpu_custom_call.1} parent=1 // pred_region
      %65 = dma.done [#allocation6], 1024
    $region17: #{tpu_custom_call.1} parent=1 // pred_fallthru
      _
    %s66 = sadd.s32 0, 0
    %p67 = scmp.lt.s32.totalorder %s66, 0
    %s68 = scalar_select %p67, %s66, 0
    %s69 = smul.u32 8, %s68
    %s70 = ssub.s32 2, %s69
    %s71 = smul.u32 8, %s70
    %s72 = sadd.s32 0, 0
    %p73 = scmp.lt.s32.totalorder %s72, 0
    %s74 = scalar_select %p73, %s72, 0
    %s75 = smul.u32 8, %s74
    %s76 = ssub.s32 2, %s75
    %s77 = smul.u32 8, %s76
    %p78 = scmp.eq.s32.totalorder 0, 0
    // Predicated region
    $region18: #{tpu_custom_call.1} parent=1 // pred_check
      %p79 = pneg %p78
    $region19: #{tpu_custom_call.1} parent=1 // pred_check_branch
      %81 = sbr.rel (%p79) target = $region21
    $region20: #{tpu_custom_call.1} parent=1 // pred_region
      %82 = vst [vmem:[#allocation7] sm:$0xff] 0.0
      %83 = vst [vmem:[#allocation7 + $0x8] sm:$0xff] 0.0
      %84 = vst [vmem:[#allocation7 + $0x10] sm:$0xff] 0.0
      %85 = vst [vmem:[#allocation7 + $0x18] sm:$0xff] 0.0
      %86 = vst [vmem:[#allocation7 + $0x20] sm:$0xff] 0.0
      %87 = vst [vmem:[#allocation7 + $0x28] sm:$0xff] 0.0
      %88 = vst [vmem:[#allocation7 + $0x30] sm:$0xff] 0.0
      %89 = vst [vmem:[#allocation7 + $0x38] sm:$0xff] 0.0
    $region21: #{tpu_custom_call.1} parent=1 // pred_fallthru
      _
    %v90 = vld [vmem:[#allocation2] sm:$0xff]
    %v91 = vld [vmem:[#allocation2 + $0x8] sm:$0xff]
    %v92 = vld [vmem:[#allocation2 + $0x10] sm:$0xff]
    %v93 = vld [vmem:[#allocation2 + $0x18] sm:$0xff]
    %v94 = vld [vmem:[#allocation2 + $0x20] sm:$0xff]
    %v95 = vld [vmem:[#allocation2 + $0x28] sm:$0xff]
    %v96 = vld [vmem:[#allocation2 + $0x30] sm:$0xff]
    %v97 = vld [vmem:[#allocation2 + $0x38] sm:$0xff]
    %v98 = vld [vmem:[#allocation5] sm:$0xff]
    %v99 = vld [vmem:[#allocation5 + $0x8] sm:$0xff]
    %v100 = vld [vmem:[#allocation5 + $0x10] sm:$0xff]
    %v101 = vld [vmem:[#allocation5 + $0x18] sm:$0xff]
    %v102 = vld [vmem:[#allocation5 + $0x20] sm:$0xff]
    %v103 = vld [vmem:[#allocation5 + $0x28] sm:$0xff]
    %v104 = vld [vmem:[#allocation5 + $0x30] sm:$0xff]
    %v105 = vld [vmem:[#allocation5 + $0x38] sm:$0xff]
    %v106 = vsub.f32 %v90, %v98
    %v107 = vsub.f32 %v91, %v99
    %v108 = vsub.f32 %v92, %v100
    %v109 = vsub.f32 %v93, %v101
    %v110 = vsub.f32 %v94, %v102
    %v111 = vsub.f32 %v95, %v103
    %v112 = vsub.f32 %v96, %v104
    %v113 = vsub.f32 %v97, %v105
    %v114 = vand.u32 2147483647, %v106
    %v115 = vand.u32 2147483647, %v107
    %v116 = vand.u32 2147483647, %v108
    %v117 = vand.u32 2147483647, %v109
    %v118 = vand.u32 2147483647, %v110
    %v119 = vand.u32 2147483647, %v111
    %v120 = vand.u32 2147483647, %v112
    %v121 = vand.u32 2147483647, %v113
    %s122 = sadd.s32 0, 0
    %p123 = scmp.lt.s32.totalorder %s122, 0
    // Predicated region
    $region22: #{tpu_custom_call.1} parent=1 // pred_check
      %p124 = pneg %p123
    $region23: #{tpu_custom_call.1} parent=1 // pred_check_branch
      %126 = sbr.rel (%p124) target = $region25
    $region24: #{tpu_custom_call.1} parent=1 // pred_region
      %v127 = vld [vmem:[#allocation7] sm:$0xff]
      %v128 = vld [vmem:[#allocation7 + $0x8] sm:$0xff]
      %v129 = vld [vmem:[#allocation7 + $0x10] sm:$0xff]
      %v130 = vld [vmem:[#allocation7 + $0x18] sm:$0xff]
      %v131 = vld [vmem:[#allocation7 + $0x20] sm:$0xff]
      %v132 = vld [vmem:[#allocation7 + $0x28] sm:$0xff]
      %v133 = vld [vmem:[#allocation7 + $0x30] sm:$0xff]
      %v134 = vld [vmem:[#allocation7 + $0x38] sm:$0xff]
      %v135 = vadd.f32 %v114, 0.0
      %v136 = vadd.f32 %v115, 0.0
      %v137 = vadd.f32 %v116, 0.0
      %v138 = vadd.f32 %v117, 0.0
      %v139 = vadd.f32 %v118, 0.0
      %v140 = vadd.f32 %v119, 0.0
      %v141 = vadd.f32 %v120, 0.0
      %v142 = vadd.f32 %v121, 0.0
      %v143 = vadd.f32 %v127, %v135
      %v144 = vadd.f32 %v128, %v136
      %v145 = vadd.f32 %v129, %v137
      %v146 = vadd.f32 %v130, %v138
      %v147 = vadd.f32 %v131, %v139
      %v148 = vadd.f32 %v132, %v140
      %v149 = vadd.f32 %v133, %v141
      %v150 = vadd.f32 %v134, %v142
      %151 = vst [vmem:[#allocation7] sm:$0xff] %v143
      %152 = vst [vmem:[#allocation7 + $0x8] sm:$0xff] %v144
      %153 = vst [vmem:[#allocation7 + $0x10] sm:$0xff] %v145
      %154 = vst [vmem:[#allocation7 + $0x18] sm:$0xff] %v146
      %155 = vst [vmem:[#allocation7 + $0x20] sm:$0xff] %v147
      %156 = vst [vmem:[#allocation7 + $0x28] sm:$0xff] %v148
      %157 = vst [vmem:[#allocation7 + $0x30] sm:$0xff] %v149
      %158 = vst [vmem:[#allocation7 + $0x38] sm:$0xff] %v150
    $region25: #{tpu_custom_call.1} parent=1 // pred_fallthru
      _
    %p159 = scmp.ge.s32.totalorder %s122, 0
    // Predicated region
    $region26: #{tpu_custom_call.1} parent=1 // pred_check
      %p160 = pneg %p159
    $region27: #{tpu_custom_call.1} parent=1 // pred_check_branch
      %162 = sbr.rel (%p160) target = $region29
    $region28: #{tpu_custom_call.1} parent=1 // pred_region
      %s163 = smul.u32 %s122, 64
      %v164 = vlaneseq
      %v165 = vshrl.u32 %v164, 7
      %v166 = vadd.s32 %v165, 8
      %v167 = vadd.s32 %v165, 16
      %v168 = vadd.s32 %v165, 24
      %v169 = vadd.s32 %v165, 32
      %v170 = vadd.s32 %v165, 40
      %v171 = vadd.s32 %v165, 48
      %v172 = vadd.s32 %v165, 56
      %v173 = vstv %s163
      %v174 = vadd.s32 %v173, %v165
      %v175 = vadd.s32 %v173, %v166
      %v176 = vadd.s32 %v173, %v167
      %v177 = vadd.s32 %v173, %v168
      %v178 = vadd.s32 %v173, %v169
      %v179 = vadd.s32 %v173, %v170
      %v180 = vadd.s32 %v173, %v171
      %v181 = vadd.s32 %v173, %v172
      %v182 = vld [vmem:[#allocation7] sm:$0xff]
      %v183 = vld [vmem:[#allocation7 + $0x8] sm:$0xff]
      %v184 = vld [vmem:[#allocation7 + $0x10] sm:$0xff]
      %v185 = vld [vmem:[#allocation7 + $0x18] sm:$0xff]
      %v186 = vld [vmem:[#allocation7 + $0x20] sm:$0xff]
      %v187 = vld [vmem:[#allocation7 + $0x28] sm:$0xff]
      %v188 = vld [vmem:[#allocation7 + $0x30] sm:$0xff]
      %v189 = vld [vmem:[#allocation7 + $0x38] sm:$0xff]
      %vm190 = vcmp.lt.s32.totalorder %v174, 16
      %vm191 = vcmp.lt.s32.totalorder %v175, 16
      %vm192 = vcmp.lt.s32.totalorder %v176, 16
      %vm193 = vcmp.lt.s32.totalorder %v177, 16
      %vm194 = vcmp.lt.s32.totalorder %v178, 16
      %vm195 = vcmp.lt.s32.totalorder %v179, 16
      %vm196 = vcmp.lt.s32.totalorder %v180, 16
      %vm197 = vcmp.lt.s32.totalorder %v181, 16
      %v198 = vsel %vm190, %v114, 0.0
      %v199 = vsel %vm191, %v115, 0.0
      %v200 = vsel %vm192, %v116, 0.0
      %v201 = vsel %vm193, %v117, 0.0
      %v202 = vsel %vm194, %v118, 0.0
      %v203 = vsel %vm195, %v119, 0.0
      %v204 = vsel %vm196, %v120, 0.0
      %v205 = vsel %vm197, %v121, 0.0
      %v206 = vadd.f32 %v198, 0.0
      %v207 = vadd.f32 %v199, 0.0
      %v208 = vadd.f32 %v200, 0.0
      %v209 = vadd.f32 %v201, 0.0
      %v210 = vadd.f32 %v202, 0.0
      %v211 = vadd.f32 %v203, 0.0
      %v212 = vadd.f32 %v204, 0.0
      %v213 = vadd.f32 %v205, 0.0
      %v214 = vadd.f32 %v182, %v206
      %v215 = vadd.f32 %v183, %v207
      %v216 = vadd.f32 %v184, %v208
      %v217 = vadd.f32 %v185, %v209
      %v218 = vadd.f32 %v186, %v210
      %v219 = vadd.f32 %v187, %v211
      %v220 = vadd.f32 %v188, %v212
      %v221 = vadd.f32 %v189, %v213
      %222 = vst [vmem:[#allocation7] sm:$0xff] %v214
      %223 = vst [vmem:[#allocation7 + $0x8] sm:$0xff] %v215
      %224 = vst [vmem:[#allocation7 + $0x10] sm:$0xff] %v216
      %225 = vst [vmem:[#allocation7 + $0x18] sm:$0xff] %v217
      %226 = vst [vmem:[#allocation7 + $0x20] sm:$0xff] %v218
      %227 = vst [vmem:[#allocation7 + $0x28] sm:$0xff] %v219
      %228 = vst [vmem:[#allocation7 + $0x30] sm:$0xff] %v220
      %229 = vst [vmem:[#allocation7 + $0x38] sm:$0xff] %v221
    $region29: #{tpu_custom_call.1} parent=1 // pred_fallthru
      _
    // Predicated region
    $region30: #{tpu_custom_call.1} parent=1 // pred_check
      _
    $region31: #{tpu_custom_call.1} parent=1 // pred_check_branch
      %231 = sbr.rel (0) target = $region33
    $region32: #{tpu_custom_call.1} parent=1 // pred_region
      %233 = vsyncadd [#allocation4], 0
      %s234 = sshll.u32 [#allocation7], 4
      %s235 = int_to_ptr.vmem [resolvable:$true] %s234
      %s236 = sshll.u32 %s2, 4
      %s237 = int_to_ptr.hbm [resolvable:$true] %s236
      %242 = dma.vmem_to_hbm [thread:$0]  %s235, 1024, %s237, [#allocation4], 128, 128, 8
    $region33: #{tpu_custom_call.1} parent=1 // pred_fallthru
      _
    // Predicated region
    $region34: #{tpu_custom_call.1} parent=1 // pred_check
      _
    $region35: #{tpu_custom_call.1} parent=1 // pred_check_branch
      %244 = sbr.rel (0) target = $region37
    $region36: #{tpu_custom_call.1} parent=1 // pred_region
      %246 = dma.done [#allocation4], 1024
    $region37: #{tpu_custom_call.1} parent=1 // pred_fallthru
      _
    %247 = vsyncpa [#allocation3], 1
    %248 = vsyncpa [#allocation6], 1
    %249 = vsyncpa [#allocation4], 1

</llo_original>
